<compile_context>
chip_gen: v7x
topology: tpu7x:2x2x1
jax: 0.10.0
libtpu: 0.0.40
codegen_flags: <defaults>
</compile_context>

<pallas_src>
import jax
import jax.numpy as jnp
from jax.experimental import pallas as pl
from jax.experimental.pallas import tpu as pltpu

_LANE = 128


def _round_up(n, m):
    return ((n + m - 1) // m) * m


# --------------------------------------------------------------------------
# Kernel body: two MXU matmuls (f32 accumulate), ReLU on the VPU, stable
# row-softmax with exp on the EUP.  Padded output lanes carry a -1e30 bias so
# their softmax mass underflows to 0 and the stores stay unmasked/lane-dense.
# --------------------------------------------------------------------------
def actor_critic_kernel(x_ref, w1_ref, b1_ref, w2_ref, b2_ref, o_ref):
    x = x_ref[...]
    w1 = w1_ref[...]
    w2 = w2_ref[...]

    h = jnp.dot(x, w1, preferred_element_type=jnp.float32) + b1_ref[...]
    h = jnp.maximum(h, 0.0)

    logits = (jnp.dot(h.astype(w2.dtype), w2,
                      preferred_element_type=jnp.float32) + b2_ref[...])

    # numerically-stable softmax over the last axis (f32 throughout)
    m = jnp.max(logits, axis=-1, keepdims=True)
    e = jnp.exp(logits - m)
    denom = jnp.sum(e, axis=-1, keepdims=True)
    o_ref[...] = (e / denom).astype(o_ref.dtype)       # exact divide


def _cost_estimate(b, n_in, n_l1_p, n_out_p, in_bytes):
    flops = 2 * b * (n_in * n_l1_p + n_l1_p * n_out_p)
    transcendentals = b * n_out_p                      # exp
    bytes_accessed = (in_bytes * (b * n_in + n_in * n_l1_p + n_l1_p * n_out_p)
                      + 4 * (n_l1_p + n_out_p + b * n_out_p))
    return pl.CostEstimate(flops=flops,
                           transcendentals=transcendentals,
                           bytes_accessed=bytes_accessed)


def _no_grid_row_limit(n_in, n_l1_p, n_out_p, in_bytes):
    """Max batch rows for the single-tile (no-grid) path, gated by a
    conservative per-generation VMEM budget (safe on v5e/v6e/v7x without
    raising the scoped-VMEM default)."""
    try:
        vmem = pltpu.get_tpu_info().vmem_capacity_bytes
    except Exception:
        vmem = 64 * 1024 * 1024                        # v7x-safe fallback
    budget = min(vmem // 4, 16 * 1024 * 1024)
    per_row = n_in * in_bytes + (n_l1_p + 2 * n_out_p) * 4   # x + h + e + out
    return max(8, budget // per_row)


# --------------------------------------------------------------------------
# One-time parameter preparation (hoisted out of the per-call path).
# Padded hidden units: zero weights + zero bias -> relu(0) = 0.
# Padded output lanes: zero weights + bias -1e30 -> softmax mass ~0.
# --------------------------------------------------------------------------
def prepare_params(w1, b1, w2, b2, matmul_dtype=jnp.bfloat16):
    """w1: [n_in, n_l1], b1: [n_l1], w2: [n_l1, n_out], b2: [n_out]."""
    n_in, n_l1 = w1.shape
    n_out = w2.shape[1]
    n_l1_p = _round_up(n_l1, _LANE)
    n_out_p = _round_up(n_out, _LANE)

    w1_p = (jnp.zeros((n_in, n_l1_p), jnp.float32)
            .at[:, :n_l1].set(w1).astype(matmul_dtype))
    b1_p = jnp.zeros((1, n_l1_p), jnp.float32).at[:, :n_l1].set(
        b1.reshape(1, -1))
    w2_p = (jnp.zeros((n_l1_p, n_out_p), jnp.float32)
            .at[:n_l1, :n_out].set(w2).astype(matmul_dtype))
    b2_p = jnp.full((1, n_out_p), -1e30, jnp.float32).at[:, :n_out].set(
        b2.reshape(1, -1))
    return (w1_p, b1_p, w2_p, b2_p, n_out)


# --------------------------------------------------------------------------
# Forward: probs = softmax(relu(x @ w1 + b1) @ w2 + b2, axis=-1)
# --------------------------------------------------------------------------
def actor_critic_forward(x, params, *, tb=1024, core_parallel=False,
                         out_dtype=jnp.float32, max_no_grid_rows=None):
    """x: [B, n_in] (a 1-D input is treated as a single row, matching the
    PyTorch softmax(dim=0) branch).  `params` comes from prepare_params()."""
    w1_p, b1_p, w2_p, b2_p, n_out = params

    squeeze = (x.ndim == 1)
    if squeeze:
        x = x[None, :]

    B, n_in = x.shape
    n_l1_p = w1_p.shape[1]
    n_out_p = w2_p.shape[1]
    matmul_dtype = w1_p.dtype
    in_bytes = jnp.dtype(matmul_dtype).itemsize

    x = x.astype(matmul_dtype)

    no_grid_max = (max_no_grid_rows if max_no_grid_rows is not None
                   else _no_grid_row_limit(n_in, n_l1_p, n_out_p, in_bytes))

    if B <= no_grid_max:
        # Single tile: no grid / pipeline scaffolding; whole problem in VMEM.
        if B % 8 != 0:
            b_pad = _round_up(max(B, 8), 8)
            x = jnp.zeros((b_pad, n_in), matmul_dtype).at[:B].set(x)
        else:
            b_pad = B
        vmem = pl.BlockSpec(memory_space=pltpu.MemorySpace.VMEM)
        out = pl.pallas_call(
            actor_critic_kernel,
            out_shape=jax.ShapeDtypeStruct((b_pad, n_out_p), out_dtype),
            in_specs=[vmem, vmem, vmem, vmem, vmem],
            out_specs=vmem,
            cost_estimate=_cost_estimate(b_pad, n_in, n_l1_p, n_out_p,
                                         in_bytes),
        )(x, w1_p, b1_p, w2_p, b2_p)
    else:
        # Batch-tiled grid.  Weights/biases stay VMEM-resident across all grid
        # steps (index_map -> (0, 0)).  No pre-padding of x: Pallas masks the
        # ragged last block's read/writeback.  core_parallel=True shards the
        # batch axis across both v7x TensorCores.
        semantics = (pltpu.CORE_PARALLEL if core_parallel else "parallel",)
        out = pl.pallas_call(
            actor_critic_kernel,
            out_shape=jax.ShapeDtypeStruct((B, n_out_p), out_dtype),
            grid=(pl.cdiv(B, tb),),
            in_specs=[
                pl.BlockSpec((tb, n_in), lambda i: (i, 0)),
                pl.BlockSpec((n_in, n_l1_p), lambda i: (0, 0)),
                pl.BlockSpec((1, n_l1_p), lambda i: (0, 0)),
                pl.BlockSpec((n_l1_p, n_out_p), lambda i: (0, 0)),
                pl.BlockSpec((1, n_out_p), lambda i: (0, 0)),
            ],
            out_specs=pl.BlockSpec((tb, n_out_p), lambda i: (i, 0)),
            compiler_params=pltpu.CompilerParams(
                dimension_semantics=semantics),
            cost_estimate=_cost_estimate(B, n_in, n_l1_p, n_out_p, in_bytes),
        )(x, w1_p, b1_p, w2_p, b2_p)

    probs = out[:B, :n_out]
    return probs[0] if squeeze else probs


def init_params(key, n_input, n_out, n_l1=20):
    """Matches ActorCriticNet.__init__: weight ~ N(0, 0.1), bias = 0.1.
    Weights are stored directly in [in, out] layout for the kernel."""
    k1, k2 = jax.random.split(key)
    w1 = 0.1 * jax.random.normal(k1, (n_input, n_l1), dtype=jnp.float32)
    b1 = jnp.full((n_l1,), 0.1, dtype=jnp.float32)
    w2 = 0.1 * jax.random.normal(k2, (n_l1, n_out), dtype=jnp.float32)
    b2 = jnp.full((n_out,), 0.1, dtype=jnp.float32)
    return w1, b1, w2, b2


if __name__ == "__main__":
    key = jax.random.PRNGKey(0)
    k_params, k_x1, k_x2 = jax.random.split(key, 3)

    n_input, n_out, n_l1 = 4, 2, 20   # small RL-style state/action dims
    w1, b1, w2, b2 = init_params(k_params, n_input, n_out, n_l1)

    # one-time parameter preparation (hoisted out of the per-call path)
    params_bf16 = prepare_params(w1, b1, w2, b2)                       # bf16 MXU operands
    params_f32 = prepare_params(w1, b1, w2, b2, matmul_dtype=jnp.float32)

    def ref_forward(x):
        x2 = x[None, :] if x.ndim == 1 else x
        h = jnp.maximum(x2 @ w1 + b1[None, :], 0.0)
        logits = h @ w2 + b2[None, :]
        p = jax.nn.softmax(logits, axis=1)
        return p[0] if x.ndim == 1 else p

    x_small = jax.random.normal(k_x1, (8, n_input), dtype=jnp.float32)
    x_big = jax.random.normal(k_x2, (1000, n_input), dtype=jnp.float32)
    x_1d = x_small[0]

    cases = [
        # (input, params, kwargs, tolerance)
        (x_small, params_f32, {}, 2e-3),                                   # no-grid, f32
        (x_small, params_bf16, {}, 1e-2),                                  # no-grid, bf16
        (x_1d, params_f32, {}, 2e-3),                                      # 1-D (softmax dim 0) branch
        (x_big, params_f32, dict(tb=256, max_no_grid_rows=0), 2e-3),       # grid path, ragged last block
        (x_big, params_bf16, dict(tb=256, max_no_grid_rows=0), 1e-2),      # grid path, bf16
    ]

    for x, params, kw, tol in cases:
        probs = jax.block_until_ready(actor_critic_forward(x, params, **kw))
        ref = ref_forward(x)
        assert probs.shape == ref.shape
        assert bool(jnp.all(probs >= 0.0))
        # exact divide -> rows sum to 1 to f32 precision
        assert bool(jnp.allclose(jnp.sum(probs, axis=-1), 1.0, atol=1e-5))
        assert bool(jnp.allclose(probs, ref, atol=tol, rtol=tol))

    print("KERNEL_OK")
</pallas_src>

<mosaic_0001>
module attributes {stable_mosaic.version = 11 : i64} {
  func.func @actor_critic_kernel(%arg0: memref<8x4xf32, #tpu.memory_space<vmem>>, %arg1: memref<4x128xf32, #tpu.memory_space<vmem>>, %arg2: memref<1x128xf32, #tpu.memory_space<vmem>>, %arg3: memref<128x128xf32, #tpu.memory_space<vmem>>, %arg4: memref<1x128xf32, #tpu.memory_space<vmem>>, %arg5: memref<8x128xf32, #tpu.memory_space<vmem>>) attributes {dimension_semantics = [], scalar_prefetch = 0 : i64, scratch_operands = 0 : i64, tpu.core_type = #tpu.core_type<tc>} {
    %c0 = arith.constant 0 : index
    %c0_0 = arith.constant 0 : index
    %0 = vector.load %arg0[%c0, %c0_0] : memref<8x4xf32, #tpu.memory_space<vmem>>, vector<8x4xf32>
    %c0_1 = arith.constant 0 : index
    %c0_2 = arith.constant 0 : index
    %1 = vector.load %arg1[%c0_1, %c0_2] : memref<4x128xf32, #tpu.memory_space<vmem>>, vector<4x128xf32>
    %c0_3 = arith.constant 0 : index
    %c0_4 = arith.constant 0 : index
    %2 = vector.load %arg3[%c0_3, %c0_4] : memref<128x128xf32, #tpu.memory_space<vmem>>, vector<128x128xf32>
    %cst = arith.constant dense<0.000000e+00> : vector<8x128xf32>
    %3 = tpu.matmul %0, %1, %cst {dimension_numbers = #tpu.dot_dimension_numbers<[1], [0], [0], [1], [0, 0, 1, 1], [], []>} : vector<8x4xf32>, vector<4x128xf32>, vector<8x128xf32> -> vector<8x128xf32>
    %c0_5 = arith.constant 0 : index
    %c0_6 = arith.constant 0 : index
    %4 = vector.load %arg2[%c0_5, %c0_6] : memref<1x128xf32, #tpu.memory_space<vmem>>, vector<1x128xf32>
    %5 = vector.broadcast %4 : vector<1x128xf32> to vector<8x128xf32>
    %6 = arith.addf %3, %5 : vector<8x128xf32>
    %cst_7 = arith.constant 0.000000e+00 : f32
    %7 = vector.broadcast %cst_7 : f32 to vector<8x128xf32>
    %8 = arith.maximumf %6, %7 : vector<8x128xf32>
    %cst_8 = arith.constant dense<0.000000e+00> : vector<8x128xf32>
    %9 = tpu.matmul %8, %2, %cst_8 {dimension_numbers = #tpu.dot_dimension_numbers<[1], [0], [0], [1], [0, 0, 1, 1], [], []>} : vector<8x128xf32>, vector<128x128xf32>, vector<8x128xf32> -> vector<8x128xf32>
    %c0_9 = arith.constant 0 : index
    %c0_10 = arith.constant 0 : index
    %10 = vector.load %arg4[%c0_9, %c0_10] : memref<1x128xf32, #tpu.memory_space<vmem>>, vector<1x128xf32>
    %11 = vector.broadcast %10 : vector<1x128xf32> to vector<8x128xf32>
    %12 = arith.addf %9, %11 : vector<8x128xf32>
    %cst_11 = arith.constant dense<0xFF800000> : vector<8xf32>
    %13 = vector.multi_reduction <maximumf>, %12, %cst_11 [1] : vector<8x128xf32> to vector<8xf32>
    %14 = vector.shape_cast %13 : vector<8xf32> to vector<8x1xf32>
    %15 = vector.broadcast %14 : vector<8x1xf32> to vector<8x128xf32>
    %16 = arith.subf %12, %15 : vector<8x128xf32>
    %17 = math.exp %16 : vector<8x128xf32>
    %cst_12 = arith.constant dense<0.000000e+00> : vector<8xf32>
    %18 = vector.multi_reduction <add>, %17, %cst_12 [1] : vector<8x128xf32> to vector<8xf32>
    %19 = vector.shape_cast %18 : vector<8xf32> to vector<8x1xf32>
    %20 = vector.broadcast %19 : vector<8x1xf32> to vector<8x128xf32>
    %21 = arith.divf %17, %20 : vector<8x128xf32>
    %c0_13 = arith.constant 0 : index
    %c0_14 = arith.constant 0 : index
    %22 = vector.load %arg5[%c0_13, %c0_14] : memref<8x128xf32, #tpu.memory_space<vmem>>, vector<8x128xf32>
    tpu.vector_store %arg5[%c0_13, %c0_14], %21 {strides = array<i32>} : memref<8x128xf32, #tpu.memory_space<vmem>>, vector<8x128xf32>,
    return
  }
}

</mosaic_0001>

<llo_original>
// kernel: tpu_custom_call.1
$region0: #{tpu_custom_call.1}
  #allocation0 [shape = 'u32[]', space=smem, size = 0x4, offset = 0x4, fixed_abs, tag = 'smem constant byte address 0x4 - core index']
  #allocation1 [shape = 'u32[144,128]{1,0:T(1,128)}', space=vmem, size = 0x12000, scoped, tag = 'internal scratch']
  %s0 = inlined_call_operand.vmem [shape: f32[8,4], index: 0, kind: input, shape index: {}]
  %s1 = inlined_call_operand.vmem [shape: f32[4,128], index: 1, kind: input, shape index: {}]
  %s2 = inlined_call_operand.vmem [shape: f32[1,128], index: 2, kind: input, shape index: {}]
  %s3 = inlined_call_operand.hbm [shape: f32[128,128], index: 3, kind: input, shape index: {}]
  %s4 = inlined_call_operand.vmem [shape: f32[1,128], index: 4, kind: input, shape index: {}]
  %s5 = inlined_call_operand.hbm [shape: f32[8,128], index: 5, kind: output, shape index: {}]
  %s6 = sld [smem:[#allocation0]]
  $region34: #{tpu_custom_call.1} parent=0
    _
  %s8 = ssub.s32 1, %s6
  %s9 = scalar_select 0, %s8, %s6
  $region1: #{tpu_custom_call.1} parent=0
    #allocation2 [shape = 'u8[65536]{0}', space=vmem, size = 0x10000, scoped, tag = 'input window, operand 3, single buffered']
    #allocation3 [shape = 's32[1]{0}', space=sflag, size = 0x4, scoped, tag = 'scoped memory for tpu_custom_call.1']
    #allocation4 [shape = 's32[1]{0}', space=sflag, size = 0x4, scoped, tag = 'scoped memory for tpu_custom_call.1']
    #allocation5 [shape = 'u8[4096]{0}', space=vmem, size = 0x1000, scoped, tag = 'output window, operand 0, single buffered']
    %10 = vsyncpa [#allocation3], 0
    %11 = vsyncpa [#allocation4], 0
    // Predicated region
    $region2: #{tpu_custom_call.1} parent=1 // pred_check
      _
    $region3: #{tpu_custom_call.1} parent=1 // pred_check_branch
      %13 = sbr.rel (0) target = $region5
    $region4: #{tpu_custom_call.1} parent=1 // pred_region
      _
    $region5: #{tpu_custom_call.1} parent=1 // pred_fallthru
      _
    // Predicated region
    $region6: #{tpu_custom_call.1} parent=1 // pred_check
      _
    $region7: #{tpu_custom_call.1} parent=1 // pred_check_branch
      %15 = sbr.rel (0) target = $region9
    $region8: #{tpu_custom_call.1} parent=1 // pred_region
      _
    $region9: #{tpu_custom_call.1} parent=1 // pred_fallthru
      _
    // Predicated region
    $region10: #{tpu_custom_call.1} parent=1 // pred_check
      _
    $region11: #{tpu_custom_call.1} parent=1 // pred_check_branch
      %17 = sbr.rel (0) target = $region13
    $region12: #{tpu_custom_call.1} parent=1 // pred_region
      _
    $region13: #{tpu_custom_call.1} parent=1 // pred_fallthru
      _
    // Predicated region
    $region14: #{tpu_custom_call.1} parent=1 // pred_check
      _
    $region15: #{tpu_custom_call.1} parent=1 // pred_check_branch
      %19 = sbr.rel (0) target = $region17
    $region16: #{tpu_custom_call.1} parent=1 // pred_region
      %s21 = ssub.s32 2048, 2048
      %22 = vsyncadd [#allocation3], %s21
      %s23 = sshll.u32 [#allocation2], 4
      %s24 = int_to_ptr.vmem [resolvable:$true] %s23
      %29 = dma.hbm_to_vmem [thread:$0]  %s3, 2048, %s24, [#allocation3], 128, 128, 8
    $region17: #{tpu_custom_call.1} parent=1 // pred_fallthru
      _
    // Predicated region
    $region18: #{tpu_custom_call.1} parent=1 // pred_check
      _
    $region19: #{tpu_custom_call.1} parent=1 // pred_check_branch
      %31 = sbr.rel (0) target = $region21
    $region20: #{tpu_custom_call.1} parent=1 // pred_region
      _
    $region21: #{tpu_custom_call.1} parent=1 // pred_fallthru
      _
    // Predicated region
    $region22: #{tpu_custom_call.1} parent=1 // pred_check
      _
    $region23: #{tpu_custom_call.1} parent=1 // pred_check_branch
      %33 = sbr.rel (0) target = $region25
    $region24: #{tpu_custom_call.1} parent=1 // pred_region
      %34 = dma.done [#allocation3], 2048
    $region25: #{tpu_custom_call.1} parent=1 // pred_fallthru
      _
    %v35 = vld [vmem:[%s0] sm:$0xff]
    %v36 = vld [vmem:[%s1] sm:$0xf]
    %v37 = vld [vmem:[#allocation2] sm:$0xff]
    %v38 = vld [vmem:[#allocation2 + $0x8] sm:$0xff]
    %v39 = vld [vmem:[#allocation2 + $0x10] sm:$0xff]
    %v40 = vld [vmem:[#allocation2 + $0x18] sm:$0xff]
    %v41 = vld [vmem:[#allocation2 + $0x20] sm:$0xff]
    %v42 = vld [vmem:[#allocation2 + $0x28] sm:$0xff]
    %v43 = vld [vmem:[#allocation2 + $0x30] sm:$0xff]
    %v44 = vld [vmem:[#allocation2 + $0x38] sm:$0xff]
    %v45 = vld [vmem:[#allocation2 + $0x40] sm:$0xff]
    %v46 = vld [vmem:[#allocation2 + $0x48] sm:$0xff]
    %v47 = vld [vmem:[#allocation2 + $0x50] sm:$0xff]
    %v48 = vld [vmem:[#allocation2 + $0x58] sm:$0xff]
    %v49 = vld [vmem:[#allocation2 + $0x60] sm:$0xff]
    %v50 = vld [vmem:[#allocation2 + $0x68] sm:$0xff]
    %v51 = vld [vmem:[#allocation2 + $0x70] sm:$0xff]
    %v52 = vld [vmem:[#allocation2 + $0x78] sm:$0xff]
    %v53 = vld [vmem:[%s2] sm:$0x1]
    %v55 = vlaneseq
    %v56 = vshrl.u32 %v55, 7
    %v57 = vsub.s32 0, %v56
    %v58 = vrot.slane %v53, %v57
    %vm60 = vcmask 31744
    %v62 = vsel %vm60, %v35, 0
    %vm64 = vcmask 1043456
    %v66 = vsel %vm64, %v36, 0
    %68 = vmatprep.subr.mxu0 0.0
    %69 = vmatpush1.msra.mxu0 %v66
    %70 = vmatprep.subr.mxu0 0.0
    %71 = vmatpush1.msra.mxu0 0.0
    %72 = vmatprep.subr.mxu0 0.0
    %73 = vmatpush1.msra.mxu0 0.0
    %74 = vmatprep.subr.mxu0 0.0
    %75 = vmatpush1.msra.mxu0 0.0
    %76 = vmatprep.subr.mxu0 0.0
    %77 = vmatpush1.msra.mxu0 0.0
    %78 = vmatprep.subr.mxu0 0.0
    %79 = vmatpush1.msra.mxu0 0.0
    %80 = vmatprep.subr.mxu0 0.0
    %81 = vmatpush1.msra.mxu0 0.0
    %82 = vmatprep.subr.mxu0 0.0
    %83 = vmatpush1.msra.mxu0 0.0
    %84 = vmatprep.subr.mxu0 0.0
    %85 = vmatpush1.msra.mxu0 0.0
    %86 = vmatprep.subr.mxu0 0.0
    %87 = vmatpush1.msra.mxu0 0.0
    %88 = vmatprep.subr.mxu0 0.0
    %89 = vmatpush1.msra.mxu0 0.0
    %90 = vmatprep.subr.mxu0 0.0
    %91 = vmatpush1.msra.mxu0 0.0
    %92 = vmatprep.subr.mxu0 0.0
    %93 = vmatpush1.msra.mxu0 0.0
    %94 = vmatprep.subr.mxu0 0.0
    %95 = vmatpush1.msra.mxu0 0.0
    %96 = vmatprep.subr.mxu0 0.0
    %97 = vmatpush1.msra.mxu0 0.0
    %98 = vmatprep.subr.mxu0 0.0
    %99 = vmatpush1.msra.mxu0 0.0
    %100 = vmatprep.subr.mxu0 0.0
    %101 = vmatpush1.msra.mxu0 0.0
    %102 = vmatprep.subr.mxu0 0.0
    %103 = vmatpush1.msra.mxu0 0.0
    %104 = vmatprep.subr.mxu0 0.0
    %105 = vmatpush1.msra.mxu0 0.0
    %106 = vmatprep.subr.mxu0 0.0
    %107 = vmatpush1.msra.mxu0 0.0
    %108 = vmatprep.subr.mxu0 0.0
    %109 = vmatpush1.msra.mxu0 0.0
    %110 = vmatprep.subr.mxu0 0.0
    %111 = vmatpush1.msra.mxu0 0.0
    %112 = vmatprep.subr.mxu0 0.0
    %113 = vmatpush1.msra.mxu0 0.0
    %114 = vmatprep.subr.mxu0 0.0
    %115 = vmatpush1.msra.mxu0 0.0
    %116 = vmatprep.subr.mxu0 0.0
    %117 = vmatpush1.msra.mxu0 0.0
    %118 = vmatprep.subr.mxu0 0.0
    %119 = vmatpush1.msra.mxu0 0.0
    %120 = vmatprep.subr.mxu0 0.0
    %121 = vmatpush1.msra.mxu0 0.0
    %122 = vmatprep.subr.mxu0 0.0
    %123 = vmatpush1.msra.mxu0 0.0
    %124 = vmatprep.subr.mxu0 0.0
    %125 = vmatpush1.msra.mxu0 0.0
    %126 = vmatprep.subr.mxu0 0.0
    %127 = vmatpush1.msra.mxu0 0.0
    %128 = vmatprep.subr.mxu0 0.0
    %129 = vmatpush1.msra.mxu0 0.0
    %130 = vmatprep.subr.mxu0 0.0
    %131 = vmatpush1.msra.mxu0 0.0
    %132 = vmatprep.mubr.f32.mxu0 0.0
    %133 = vmatmul.mubr.f32.gmra.mrb[0].mxu0 %v62
    %v134 = vpop.f32.mrb[0].mxu0
    %v135 = vadd.f32 %v58, %v134
    %v136 = vpop.f32.mrb[0].mxu0
    %137 = vdwg.mxu0
    %v138 = vmax.f32 %v135, 0.0
    %v139 = vld [vmem:[%s4] sm:$0x1]
    %v141 = vlaneseq
    %v142 = vshrl.u32 %v141, 7
    %v143 = vsub.s32 0, %v142
    %v144 = vrot.slane %v139, %v143
    %146 = vmatprep.subr.mxu0 0.0
    %147 = vmatpush1.msra.mxu0 %v37
    %148 = vmatprep.subr.mxu0 0.0
    %149 = vmatpush1.msra.mxu0 %v38
    %150 = vmatprep.subr.mxu0 0.0
    %151 = vmatpush1.msra.mxu0 %v39
    %152 = vmatprep.subr.mxu0 0.0
    %153 = vmatpush1.msra.mxu0 %v40
    %154 = vmatprep.subr.mxu0 0.0
    %155 = vmatpush1.msra.mxu0 %v41
    %156 = vmatprep.subr.mxu0 0.0
    %157 = vmatpush1.msra.mxu0 %v42
    %158 = vmatprep.subr.mxu0 0.0
    %159 = vmatpush1.msra.mxu0 %v43
    %160 = vmatprep.subr.mxu0 0.0
    %161 = vmatpush1.msra.mxu0 %v44
    %162 = vmatprep.subr.mxu0 0.0
    %163 = vmatpush1.msra.mxu0 %v45
    %164 = vmatprep.subr.mxu0 0.0
    %165 = vmatpush1.msra.mxu0 %v46
    %166 = vmatprep.subr.mxu0 0.0
    %167 = vmatpush1.msra.mxu0 %v47
    %168 = vmatprep.subr.mxu0 0.0
    %169 = vmatpush1.msra.mxu0 %v48
    %170 = vmatprep.subr.mxu0 0.0
    %171 = vmatpush1.msra.mxu0 %v49
    %172 = vmatprep.subr.mxu0 0.0
    %173 = vmatpush1.msra.mxu0 %v50
    %174 = vmatprep.subr.mxu0 0.0
    %175 = vmatpush1.msra.mxu0 %v51
    %176 = vmatprep.subr.mxu0 0.0
    %177 = vmatpush1.msra.mxu0 %v52
    %178 = vmatprep.subr.mxu0 0.0
    %179 = vmatpush1.msra.mxu0 0.0
    %180 = vmatprep.subr.mxu0 0.0
    %181 = vmatpush1.msra.mxu0 0.0
    %182 = vmatprep.subr.mxu0 0.0
    %183 = vmatpush1.msra.mxu0 0.0
    %184 = vmatprep.subr.mxu0 0.0
    %185 = vmatpush1.msra.mxu0 0.0
    %186 = vmatprep.subr.mxu0 0.0
    %187 = vmatpush1.msra.mxu0 0.0
    %188 = vmatprep.subr.mxu0 0.0
    %189 = vmatpush1.msra.mxu0 0.0
    %190 = vmatprep.subr.mxu0 0.0
    %191 = vmatpush1.msra.mxu0 0.0
    %192 = vmatprep.subr.mxu0 0.0
    %193 = vmatpush1.msra.mxu0 0.0
    %194 = vmatprep.subr.mxu0 0.0
    %195 = vmatpush1.msra.mxu0 0.0
    %196 = vmatprep.subr.mxu0 0.0
    %197 = vmatpush1.msra.mxu0 0.0
    %198 = vmatprep.subr.mxu0 0.0
    %199 = vmatpush1.msra.mxu0 0.0
    %200 = vmatprep.subr.mxu0 0.0
    %201 = vmatpush1.msra.mxu0 0.0
    %202 = vmatprep.subr.mxu0 0.0
    %203 = vmatpush1.msra.mxu0 0.0
    %204 = vmatprep.subr.mxu0 0.0
    %205 = vmatpush1.msra.mxu0 0.0
    %206 = vmatprep.subr.mxu0 0.0
    %207 = vmatpush1.msra.mxu0 0.0
    %208 = vmatprep.subr.mxu0 0.0
    %209 = vmatpush1.msra.mxu0 0.0
    %210 = vmatprep.mubr.f32.mxu0 0.0
    %211 = vmatmul.mubr.f32.gmra.mrb[0].mxu0 %v138
    %v212 = vpop.f32.mrb[0].mxu0
    %v213 = vadd.f32 %v144, %v212
    %v214 = vpop.f32.mrb[0].mxu0
    %215 = vdwg.mxu0
    %216 = vmax.xlane.f32.xlu0 %v213
    %v217 = vpop.xlane.xlu0 %216
    %v218 = vsub.f32 %v213, %v217
    %v219 = vmul.f32 %v218, 1.442695
    %v220 = vpow.pop %v219
    %221 = vadd.xlane.f32.xlu0 %v220
    %v222 = vpop.xlane.xlu0 %221
    %v223 = vrcp.pop %v222
    %v224 = vmul.f32 %v220, %v223
    %225 = vst [vmem:[#allocation5] sm:$0xff] %v224
    // Predicated region
    $region26: #{tpu_custom_call.1} parent=1 // pred_check
      _
    $region27: #{tpu_custom_call.1} parent=1 // pred_check_branch
      %227 = sbr.rel (0) target = $region29
    $region28: #{tpu_custom_call.1} parent=1 // pred_region
      %s229 = ssub.s32 128, 128
      %230 = vsyncadd [#allocation4], %s229
      %s232 = sshll.u32 [#allocation5], 4
      %s233 = int_to_ptr.vmem [resolvable:$true] %s232
      %235 = dma.vmem_to_hbm [thread:$0]  %s233, 128, %s5, [#allocation4]
    $region29: #{tpu_custom_call.1} parent=1 // pred_fallthru
      _
    // Predicated region
    $region30: #{tpu_custom_call.1} parent=1 // pred_check
      _
    $region31: #{tpu_custom_call.1} parent=1 // pred_check_branch
      %237 = sbr.rel (0) target = $region33
    $region32: #{tpu_custom_call.1} parent=1 // pred_region
      %238 = dma.done [#allocation4], 128
    $region33: #{tpu_custom_call.1} parent=1 // pred_fallthru
      _
    %239 = vsyncpa [#allocation3], 1
    %240 = vsyncpa [#allocation4], 1

</llo_original>
